<compile_context>
chip_gen: v5e
topology: v5e:2x2
jax: 0.10.0
libtpu: 0.0.40
codegen_flags: <defaults>
</compile_context>

<pallas_src>
import jax
import jax.numpy as jnp
from jax.experimental import pallas as pl
from jax.experimental.pallas import tpu as pltpu


def _round_up(x, m):
    return (x + m - 1) // m * m


def _largest_divisor_tile(dim, unit, cap):
    """Largest multiple of `unit` that is <= cap and divides `dim` (or None)."""
    best = None
    t = unit
    while t <= cap:
        if dim % t == 0:
            best = t
        t += unit
    return best


def _pick_tile(dim, unit, cap):
    """Tile = largest multiple of `unit` <= cap dividing round_up(dim, unit)."""
    padded = _round_up(dim, unit)
    t = _largest_divisor_tile(padded, unit, min(cap, padded))
    return t if t is not None else unit


# ---------------------------------------------------------------------------
# Kernels
# ---------------------------------------------------------------------------

def _weight_transform_kernel(w_ref, o_ref):
    # w_ref: (tn, tk) f32 block of the ORIGINAL (N, K) weight.
    # o_ref: (tk, tn) bf16 block of the transformed, transposed weight.
    w = w_ref[...]
    w_nn = jnp.where(w < 0.0, jnp.exp(w), w + 1.0)          # ELU(w) + 1
    o_ref[...] = jnp.transpose(w_nn).astype(o_ref.dtype)    # XLU transpose + pack


def _matmul_kernel(x_ref, w_ref, o_ref):
    # x_ref: (tm, tk) bf16, w_ref: (tk, tn) bf16 (pre-transformed), o_ref: (tm, tn) f32.
    # Output tile stays VMEM-resident across the K grid axis -> accumulate in place.
    @pl.when(pl.program_id(2) == 0)
    def _():
        o_ref[...] = jnp.zeros_like(o_ref)

    o_ref[...] += jnp.dot(x_ref[...], w_ref[...],
                          preferred_element_type=jnp.float32)


def _fused_kernel(x_ref, w_ref, o_ref):
    # Single-M-tile path: transform the raw f32 weight tile on the fly.
    # x_ref: (tm, tk) bf16, w_ref: (tn, tk) f32 raw weight, o_ref: (tm, tn) f32.
    @pl.when(pl.program_id(1) == 0)
    def _():
        o_ref[...] = jnp.zeros_like(o_ref)

    w = w_ref[...]
    w_nn_t = jnp.transpose(
        jnp.where(w < 0.0, jnp.exp(w), w + 1.0)).astype(jnp.bfloat16)
    o_ref[...] += jnp.dot(x_ref[...], w_nn_t,
                          preferred_element_type=jnp.float32)


# ---------------------------------------------------------------------------
# Wrapper
# ---------------------------------------------------------------------------

def nonneg_linear(x, weight, *, tm_max=512, tn_max=512, tk_max=512):
    """out = x @ (ELU(weight) + 1).T ; x: (M, K), weight: (N, K)."""
    M, K = x.shape
    N, K2 = weight.shape
    assert K == K2

    tm = _pick_tile(M, 8, tm_max)
    tn = _pick_tile(N, 128, tn_max)
    tk = _pick_tile(K, 128, tk_max)
    M_pad = _round_up(M, tm)
    N_pad = _round_up(N, tn)
    K_pad = _round_up(K, tk)
    n_m, n_n, n_k = M_pad // tm, N_pad // tn, K_pad // tk

    # v7x megacore: make sure at least one "parallel" axis has >= 2 tiles.
    if n_m == 1 and n_n == 1:
        tn_split = _largest_divisor_tile(N_pad, 128, min(tn_max, N_pad // 2))
        if tn_split is not None:
            tn = tn_split
            n_n = N_pad // tn

    # x: bf16 once, pad only if the tile-divisor choice didn't already align it.
    x_bf = x.astype(jnp.bfloat16)
    if (M_pad, K_pad) != (M, K):
        x_bf = jnp.pad(x_bf, ((0, M_pad - M), (0, K_pad - K)))

    # Weight stays in its original (N, K) layout; zero K-padding of x nullifies the
    # ELU(0)+1 == 1 padded weight entries, padded N columns are sliced off below.
    w_f32 = weight.astype(jnp.float32)
    if (N_pad, K_pad) != (N, K):
        w_f32 = jnp.pad(w_f32, ((0, N_pad - N), (0, K_pad - K)))

    if n_m == 1:
        # Fused path (small batch): one kernel, weight read exactly once (f32),
        # ELU+1 / transpose / bf16 cast hidden under the weight DMA.
        out = pl.pallas_call(
            _fused_kernel,
            out_shape=jax.ShapeDtypeStruct((M_pad, N_pad), jnp.float32),
            grid_spec=pltpu.PrefetchScalarGridSpec(
                num_scalar_prefetch=0,
                grid=(n_n, n_k),
                in_specs=[
                    pl.BlockSpec((M_pad, tk), lambda j, k: (0, k)),
                    pl.BlockSpec((tn, tk), lambda j, k: (j, k)),
                ],
                out_specs=pl.BlockSpec((M_pad, tn), lambda j, k: (0, j)),
            ),
            compiler_params=pltpu.CompilerParams(
                dimension_semantics=("parallel", "arbitrary"),
                vmem_limit_bytes=48 * 1024 * 1024,
            ),
        )(x_bf, w_f32)
    else:
        # Pass 1: transform + transpose + bf16-cast the weight exactly once.
        w_nn = pl.pallas_call(
            _weight_transform_kernel,
            out_shape=jax.ShapeDtypeStruct((K_pad, N_pad), jnp.bfloat16),
            grid_spec=pltpu.PrefetchScalarGridSpec(
                num_scalar_prefetch=0,
                grid=(K_pad // tk, N_pad // tn),
                in_specs=[pl.BlockSpec((tn, tk), lambda i, j: (j, i))],
                out_specs=pl.BlockSpec((tk, tn), lambda i, j: (i, j)),
            ),
            compiler_params=pltpu.CompilerParams(
                dimension_semantics=("parallel", "parallel"),
            ),
        )(w_f32)

        # Pass 2: tiled matmul, K innermost ("arbitrary"), bf16 MXU inputs,
        # f32 output tile doubles as the accumulator.
        out = pl.pallas_call(
            _matmul_kernel,
            out_shape=jax.ShapeDtypeStruct((M_pad, N_pad), jnp.float32),
            grid_spec=pltpu.PrefetchScalarGridSpec(
                num_scalar_prefetch=0,
                grid=(n_m, n_n, n_k),
                in_specs=[
                    pl.BlockSpec((tm, tk), lambda i, j, k: (i, k)),
                    pl.BlockSpec((tk, tn), lambda i, j, k: (k, j)),
                ],
                out_specs=pl.BlockSpec((tm, tn), lambda i, j, k: (i, j)),
            ),
            compiler_params=pltpu.CompilerParams(
                dimension_semantics=("parallel", "parallel", "arbitrary"),
                vmem_limit_bytes=48 * 1024 * 1024,
            ),
        )(x_bf, w_nn)

    return out[:M, :N].astype(x.dtype)


def _reference(x, weight):
    w_nn = jnp.where(weight < 0.0, jnp.exp(weight) - 1.0, weight) + 1.0
    return x @ w_nn.T


if __name__ == "__main__":
    key = jax.random.PRNGKey(0)
    k_w, k_x, k_w2, k_x2, k_w3, k_x3 = jax.random.split(key, 6)

    # Case 1: small shapes matching the module (torch.randn(d_out, d_in)/10 - 2 init).
    # Single M tile -> fused path.
    batch, d_in, d_out = 8, 32, 16
    raw_w = jax.random.normal(k_w, (d_out, d_in), dtype=jnp.float32) / 10.0 - 2.0
    x = jax.random.normal(k_x, (batch, d_in), dtype=jnp.float32)
    out = jax.block_until_ready(nonneg_linear(x, raw_w))
    ref = _reference(x, raw_w)
    assert out.shape == (batch, d_out)
    assert jnp.allclose(out, ref, atol=3e-2, rtol=2e-2), float(
        jnp.max(jnp.abs(out - ref)))

    # Case 2: forced multi-M-tile grid -> two-pass path (M/N/K tiling, K accumulation).
    batch2, d_in2, d_out2 = 160, 384, 256
    raw_w2 = jax.random.normal(k_w2, (d_out2, d_in2), dtype=jnp.float32) / 10.0 - 2.0
    x2 = jax.random.normal(k_x2, (batch2, d_in2), dtype=jnp.float32)
    out2 = jax.block_until_ready(
        nonneg_linear(x2, raw_w2, tm_max=64, tn_max=128, tk_max=128))
    ref2 = _reference(x2, raw_w2)
    assert out2.shape == (batch2, d_out2)
    # bf16 MXU inputs with f32 accumulation -> looser tolerance vs f32 reference.
    assert jnp.allclose(out2, ref2, atol=1e-1, rtol=2e-2), float(
        jnp.max(jnp.abs(out2 - ref2)))

    # Case 3: fused path with multi-tile N (megacore split) and multi-tile K.
    batch3, d_in3, d_out3 = 8, 640, 256
    raw_w3 = jax.random.normal(k_w3, (d_out3, d_in3), dtype=jnp.float32) / 10.0 - 2.0
    x3 = jax.random.normal(k_x3, (batch3, d_in3), dtype=jnp.float32)
    out3 = jax.block_until_ready(nonneg_linear(x3, raw_w3))
    ref3 = _reference(x3, raw_w3)
    assert out3.shape == (batch3, d_out3)
    assert jnp.allclose(out3, ref3, atol=1e-1, rtol=2e-2), float(
        jnp.max(jnp.abs(out3 - ref3)))

    print("KERNEL_OK")
</pallas_src>

<mosaic_0001>
module attributes {stable_mosaic.version = 11 : i64} {
  func.func @_fused_kernel(%arg0: i32, %arg1: i32, %arg2: memref<8x128xbf16, #tpu.memory_space<vmem>>, %arg3: memref<128x128xf32, #tpu.memory_space<vmem>>, %arg4: memref<8x128xf32, #tpu.memory_space<vmem>>) attributes {dimension_semantics = [#tpu.dimension_semantics<parallel>, #tpu.dimension_semantics<arbitrary>], iteration_bounds = array<i64: 1, 1>, scalar_prefetch = 0 : i64, scratch_operands = 0 : i64, tpu.core_type = #tpu.core_type<tc>, window_params = [{transform_indices = @transform_0, window_bounds = array<i64: 8, 128>}, {transform_indices = @transform_1, window_bounds = array<i64: 128, 128>}, {transform_indices = @transform_2, window_bounds = array<i64: 8, 128>}]} {
    %c0_i32 = arith.constant 0 : i32
    %0 = arith.cmpi eq, %arg1, %c0_i32 : i32
    %1 = arith.extui %0 : i1 to i32
    %c0_i32_0 = arith.constant 0 : i32
    %2 = arith.cmpi ne, %1, %c0_i32_0 : i32
    scf.if %2 {
      %cst_10 = arith.constant 0.000000e+00 : f32
      %17 = vector.broadcast %cst_10 : f32 to vector<8x128xf32>
      %c0_11 = arith.constant 0 : index
      %c0_12 = arith.constant 0 : index
      %18 = vector.load %arg4[%c0_11, %c0_12] : memref<8x128xf32, #tpu.memory_space<vmem>>, vector<8x128xf32>
      tpu.vector_store %arg4[%c0_11, %c0_12], %17 {strides = array<i32>} : memref<8x128xf32, #tpu.memory_space<vmem>>, vector<8x128xf32>,
    } else {
    }
    %c0 = arith.constant 0 : index
    %c0_1 = arith.constant 0 : index
    %3 = vector.load %arg3[%c0, %c0_1] : memref<128x128xf32, #tpu.memory_space<vmem>>, vector<128x128xf32>
    %cst = arith.constant 0.000000e+00 : f32
    %4 = vector.broadcast %cst : f32 to vector<128x128xf32>
    %5 = arith.cmpf olt, %3, %4 : vector<128x128xf32>
    %6 = math.exp %3 : vector<128x128xf32>
    %cst_2 = arith.constant 1.000000e+00 : f32
    %7 = vector.broadcast %cst_2 : f32 to vector<128x128xf32>
    %8 = arith.addf %3, %7 : vector<128x128xf32>
    %9 = arith.select %5, %6, %8 : vector<128x128xi1>, vector<128x128xf32>
    %10 = tpu.transpose %9, [1, 0] : vector<128x128xf32> -> vector<128x128xf32>
    %11 = arith.truncf %10 : vector<128x128xf32> to vector<128x128xbf16>
    %c0_3 = arith.constant 0 : index
    %c0_4 = arith.constant 0 : index
    %12 = vector.load %arg4[%c0_3, %c0_4] : memref<8x128xf32, #tpu.memory_space<vmem>>, vector<8x128xf32>
    %c0_5 = arith.constant 0 : index
    %c0_6 = arith.constant 0 : index
    %13 = vector.load %arg2[%c0_5, %c0_6] : memref<8x128xbf16, #tpu.memory_space<vmem>>, vector<8x128xbf16>
    %cst_7 = arith.constant dense<0.000000e+00> : vector<8x128xf32>
    %14 = tpu.matmul %13, %11, %cst_7 {dimension_numbers = #tpu.dot_dimension_numbers<[1], [0], [0], [1], [0, 0, 1, 1], [], []>} : vector<8x128xbf16>, vector<128x128xbf16>, vector<8x128xf32> -> vector<8x128xf32>
    %15 = arith.addf %12, %14 : vector<8x128xf32>
    %c0_8 = arith.constant 0 : index
    %c0_9 = arith.constant 0 : index
    %16 = vector.load %arg4[%c0_8, %c0_9] : memref<8x128xf32, #tpu.memory_space<vmem>>, vector<8x128xf32>
    tpu.vector_store %arg4[%c0_8, %c0_9], %15 {strides = array<i32>} : memref<8x128xf32, #tpu.memory_space<vmem>>, vector<8x128xf32>,
    return
  }
  func.func @transform_0(%arg0: i32, %arg1: i32) -> (i32, i32) {
    %c0_i32 = arith.constant 0 : i32
    %c0_i32_0 = arith.constant 0 : i32
    return %c0_i32, %arg1 : i32, i32
  }
  func.func @transform_1(%arg0: i32, %arg1: i32) -> (i32, i32) {
    %c0_i32 = arith.constant 0 : i32
    return %arg0, %arg1 : i32, i32
  }
  func.func @transform_2(%arg0: i32, %arg1: i32) -> (i32, i32) {
    %c0_i32 = arith.constant 0 : i32
    %c0_i32_0 = arith.constant 0 : i32
    return %c0_i32, %arg0 : i32, i32
  }
}

</mosaic_0001>

<llo_original>
// kernel: tpu_custom_call.1
$region0: #{tpu_custom_call.1}
  #allocation0 [shape = 'u32[]', space=smem, size = 0x4, offset = 0x4, fixed_abs, tag = 'smem constant byte address 0x4 - core index']
  #allocation1 [shape = 'u32[72,128]{1,0:T(1,128)}', space=vmem, size = 0x9000, scoped, tag = 'internal scratch']
  %s0 = inlined_call_operand.hbm [shape: bf16[8,128], index: 0, kind: input, shape index: {}]
  %s1 = inlined_call_operand.hbm [shape: f32[128,128], index: 1, kind: input, shape index: {}]
  %s2 = inlined_call_operand.hbm [shape: f32[8,128], index: 2, kind: output, shape index: {}]
  %s3 = sld [smem:[#allocation0]]
  $region30: #{tpu_custom_call.1} parent=0
    _
  %s5 = ssub.s32 1, %s3
  %s6 = scalar_select 0, %s5, %s3
  $region1: #{tpu_custom_call.1} parent=0
    #allocation2 [shape = 'u8[2048]{0}', space=vmem, size = 0x800, scoped, tag = 'input window, operand 0, single buffered']
    #allocation3 [shape = 's32[1]{0}', space=sflag, size = 0x4, scoped, tag = 'scoped memory for tpu_custom_call.1']
    #allocation4 [shape = 's32[1]{0}', space=sflag, size = 0x4, scoped, tag = 'scoped memory for tpu_custom_call.1']
    #allocation5 [shape = 'u8[65536]{0}', space=vmem, size = 0x10000, scoped, tag = 'input window, operand 1, single buffered']
    #allocation6 [shape = 's32[1]{0}', space=sflag, size = 0x4, scoped, tag = 'scoped memory for tpu_custom_call.1']
    #allocation7 [shape = 'u8[4096]{0}', space=vmem, size = 0x1000, scoped, tag = 'output window, operand 0, single buffered']
    %7 = vsyncpa [#allocation3], 0
    %8 = vsyncpa [#allocation6], 0
    %9 = vsyncpa [#allocation4], 0
    // Predicated region
    $region2: #{tpu_custom_call.1} parent=1 // pred_check
      _
    $region3: #{tpu_custom_call.1} parent=1 // pred_check_branch
      %11 = sbr.rel (0) target = $region5
    $region4: #{tpu_custom_call.1} parent=1 // pred_region
      %13 = vsyncadd [#allocation3], 0
      %s15 = sshll.u32 %s0, 4
      %s16 = int_to_ptr.hbm [resolvable:$true] %s15
      %s17 = sshll.u32 [#allocation2], 4
      %s18 = int_to_ptr.vmem [resolvable:$true] %s17
      %20 = dma.hbm_to_vmem [thread:$0]  %s16, 64, %s18, [#allocation3]
    $region5: #{tpu_custom_call.1} parent=1 // pred_fallthru
      _
    // Predicated region
    $region6: #{tpu_custom_call.1} parent=1 // pred_check
      _
    $region7: #{tpu_custom_call.1} parent=1 // pred_check_branch
      %22 = sbr.rel (0) target = $region9
    $region8: #{tpu_custom_call.1} parent=1 // pred_region
      %24 = vsyncadd [#allocation6], 0
      %s25 = sshll.u32 %s1, 4
      %s26 = int_to_ptr.hbm [resolvable:$true] %s25
      %s27 = sshll.u32 [#allocation5], 4
      %s28 = int_to_ptr.vmem [resolvable:$true] %s27
      %33 = dma.hbm_to_vmem [thread:$0]  %s26, 2048, %s28, [#allocation6], 128, 128, 8
    $region9: #{tpu_custom_call.1} parent=1 // pred_fallthru
      _
    // Predicated region
    $region10: #{tpu_custom_call.1} parent=1 // pred_check
      _
    $region11: #{tpu_custom_call.1} parent=1 // pred_check_branch
      %35 = sbr.rel (0) target = $region13
    $region12: #{tpu_custom_call.1} parent=1 // pred_region
      %37 = dma.done [#allocation3], 64
    $region13: #{tpu_custom_call.1} parent=1 // pred_fallthru
      _
    // Predicated region
    $region14: #{tpu_custom_call.1} parent=1 // pred_check
      _
    $region15: #{tpu_custom_call.1} parent=1 // pred_check_branch
      %39 = sbr.rel (0) target = $region17
    $region16: #{tpu_custom_call.1} parent=1 // pred_region
      %41 = dma.done [#allocation6], 2048
    $region17: #{tpu_custom_call.1} parent=1 // pred_fallthru
      _
    %p42 = scmp.eq.s32.totalorder 0, 0
    // Predicated region
    $region18: #{tpu_custom_call.1} parent=1 // pred_check
      %p43 = pneg %p42
    $region19: #{tpu_custom_call.1} parent=1 // pred_check_branch
      %45 = sbr.rel (%p43) target = $region21
    $region20: #{tpu_custom_call.1} parent=1 // pred_region
      %46 = vst [vmem:[#allocation7] sm:$0xff] 0.0
    $region21: #{tpu_custom_call.1} parent=1 // pred_fallthru
      _
    %v47 = vld [vmem:[#allocation5] sm:$0xff]
    %v48 = vld [vmem:[#allocation5 + $0x8] sm:$0xff]
    %v49 = vld [vmem:[#allocation5 + $0x10] sm:$0xff]
    %v50 = vld [vmem:[#allocation5 + $0x18] sm:$0xff]
    %v51 = vld [vmem:[#allocation5 + $0x20] sm:$0xff]
    %v52 = vld [vmem:[#allocation5 + $0x28] sm:$0xff]
    %v53 = vld [vmem:[#allocation5 + $0x30] sm:$0xff]
    %v54 = vld [vmem:[#allocation5 + $0x38] sm:$0xff]
    %v55 = vld [vmem:[#allocation5 + $0x40] sm:$0xff]
    %v56 = vld [vmem:[#allocation5 + $0x48] sm:$0xff]
    %v57 = vld [vmem:[#allocation5 + $0x50] sm:$0xff]
    %v58 = vld [vmem:[#allocation5 + $0x58] sm:$0xff]
    %v59 = vld [vmem:[#allocation5 + $0x60] sm:$0xff]
    %v60 = vld [vmem:[#allocation5 + $0x68] sm:$0xff]
    %v61 = vld [vmem:[#allocation5 + $0x70] sm:$0xff]
    %v62 = vld [vmem:[#allocation5 + $0x78] sm:$0xff]
    %vm63 = vcmp.lt.f32.partialorder %v47, 0.0
    %vm64 = vcmp.lt.f32.partialorder %v48, 0.0
    %vm65 = vcmp.lt.f32.partialorder %v49, 0.0
    %vm66 = vcmp.lt.f32.partialorder %v50, 0.0
    %vm67 = vcmp.lt.f32.partialorder %v51, 0.0
    %vm68 = vcmp.lt.f32.partialorder %v52, 0.0
    %vm69 = vcmp.lt.f32.partialorder %v53, 0.0
    %vm70 = vcmp.lt.f32.partialorder %v54, 0.0
    %vm71 = vcmp.lt.f32.partialorder %v55, 0.0
    %vm72 = vcmp.lt.f32.partialorder %v56, 0.0
    %vm73 = vcmp.lt.f32.partialorder %v57, 0.0
    %vm74 = vcmp.lt.f32.partialorder %v58, 0.0
    %vm75 = vcmp.lt.f32.partialorder %v59, 0.0
    %vm76 = vcmp.lt.f32.partialorder %v60, 0.0
    %vm77 = vcmp.lt.f32.partialorder %v61, 0.0
    %vm78 = vcmp.lt.f32.partialorder %v62, 0.0
    %v79 = vmul.f32 %v47, 1.442695
    %v80 = vpow.pop %v79
    %v81 = vmul.f32 %v48, 1.442695
    %v82 = vpow.pop %v81
    %v83 = vmul.f32 %v49, 1.442695
    %v84 = vpow.pop %v83
    %v85 = vmul.f32 %v50, 1.442695
    %v86 = vpow.pop %v85
    %v87 = vmul.f32 %v51, 1.442695
    %v88 = vpow.pop %v87
    %v89 = vmul.f32 %v52, 1.442695
    %v90 = vpow.pop %v89
    %v91 = vmul.f32 %v53, 1.442695
    %v92 = vpow.pop %v91
    %v93 = vmul.f32 %v54, 1.442695
    %v94 = vpow.pop %v93
    %v95 = vmul.f32 %v55, 1.442695
    %v96 = vpow.pop %v95
    %v97 = vmul.f32 %v56, 1.442695
    %v98 = vpow.pop %v97
    %v99 = vmul.f32 %v57, 1.442695
    %v100 = vpow.pop %v99
    %v101 = vmul.f32 %v58, 1.442695
    %v102 = vpow.pop %v101
    %v103 = vmul.f32 %v59, 1.442695
    %v104 = vpow.pop %v103
    %v105 = vmul.f32 %v60, 1.442695
    %v106 = vpow.pop %v105
    %v107 = vmul.f32 %v61, 1.442695
    %v108 = vpow.pop %v107
    %v109 = vmul.f32 %v62, 1.442695
    %v110 = vpow.pop %v109
    %v111 = vadd.f32 %v47, 1.0
    %v112 = vadd.f32 %v48, 1.0
    %v113 = vadd.f32 %v49, 1.0
    %v114 = vadd.f32 %v50, 1.0
    %v115 = vadd.f32 %v51, 1.0
    %v116 = vadd.f32 %v52, 1.0
    %v117 = vadd.f32 %v53, 1.0
    %v118 = vadd.f32 %v54, 1.0
    %v119 = vadd.f32 %v55, 1.0
    %v120 = vadd.f32 %v56, 1.0
    %v121 = vadd.f32 %v57, 1.0
    %v122 = vadd.f32 %v58, 1.0
    %v123 = vadd.f32 %v59, 1.0
    %v124 = vadd.f32 %v60, 1.0
    %v125 = vadd.f32 %v61, 1.0
    %v126 = vadd.f32 %v62, 1.0
    %v127 = vsel %vm63, %v80, %v111
    %v128 = vsel %vm64, %v82, %v112
    %v129 = vsel %vm65, %v84, %v113
    %v130 = vsel %vm66, %v86, %v114
    %v131 = vsel %vm67, %v88, %v115
    %v132 = vsel %vm68, %v90, %v116
    %v133 = vsel %vm69, %v92, %v117
    %v134 = vsel %vm70, %v94, %v118
    %v135 = vsel %vm71, %v96, %v119
    %v136 = vsel %vm72, %v98, %v120
    %v137 = vsel %vm73, %v100, %v121
    %v138 = vsel %vm74, %v102, %v122
    %v139 = vsel %vm75, %v104, %v123
    %v140 = vsel %vm76, %v106, %v124
    %v141 = vsel %vm77, %v108, %v125
    %v142 = vsel %vm78, %v110, %v126
    %143 = vxpose.xlu0.b32.start [1/16] %v127, 128
    %144 = vxpose.xlu0.b32.cont [2/16] %v128, 128
    %145 = vxpose.xlu0.b32.cont [3/16] %v129, 128
    %146 = vxpose.xlu0.b32.cont [4/16] %v130, 128
    %147 = vxpose.xlu0.b32.cont [5/16] %v131, 128
    %148 = vxpose.xlu0.b32.cont [6/16] %v132, 128
    %149 = vxpose.xlu0.b32.cont [7/16] %v133, 128
    %150 = vxpose.xlu0.b32.cont [8/16] %v134, 128
    %151 = vxpose.xlu0.b32.cont [9/16] %v135, 128
    %152 = vxpose.xlu0.b32.cont [10/16] %v136, 128
    %153 = vxpose.xlu0.b32.cont [11/16] %v137, 128
    %154 = vxpose.xlu0.b32.cont [12/16] %v138, 128
    %155 = vxpose.xlu0.b32.cont [13/16] %v139, 128
    %156 = vxpose.xlu0.b32.cont [14/16] %v140, 128
    %157 = vxpose.xlu0.b32.cont [15/16] %v141, 128
    %158 = vxpose.xlu0.b32.end [16/16] %v142, 128
    %v159 = vpop.trf.xlu0
    %v160 = vpop.trf.xlu0
    %v161 = vpop.trf.xlu0
    %v162 = vpop.trf.xlu0
    %v163 = vpop.trf.xlu0
    %v164 = vpop.trf.xlu0
    %v165 = vpop.trf.xlu0
    %v166 = vpop.trf.xlu0
    %v167 = vpop.trf.xlu0
    %v168 = vpop.trf.xlu0
    %v169 = vpop.trf.xlu0
    %v170 = vpop.trf.xlu0
    %v171 = vpop.trf.xlu0
    %v172 = vpop.trf.xlu0
    %v173 = vpop.trf.xlu0
    %v174 = vpop.trf.xlu0
    %v175 = vpack.c.bf16 %v160, %v159
    %v176 = vpack.c.bf16 %v162, %v161
    %v177 = vpack.c.bf16 %v164, %v163
    %v178 = vpack.c.bf16 %v166, %v165
    %v179 = vpack.c.bf16 %v168, %v167
    %v180 = vpack.c.bf16 %v170, %v169
    %v181 = vpack.c.bf16 %v172, %v171
    %v182 = vpack.c.bf16 %v174, %v173
    %v183 = vld [vmem:[#allocation7] sm:$0xff]
    %v184 = vld [vmem:[#allocation2] sm:$0xf]
    %185 = vmatpush.bf16.msra.mxu0 %v182
    %186 = vmatpush.bf16.msra.mxu0 %v181
    %187 = vmatpush.bf16.msra.mxu0 %v180
    %188 = vmatpush.bf16.msra.mxu0 %v179
    %189 = vmatpush.bf16.msra.mxu0 %v178
    %190 = vmatpush.bf16.msra.mxu0 %v177
    %191 = vmatpush.bf16.msra.mxu0 %v176
    %192 = vmatpush.bf16.msra.mxu0 %v175
    %193 = vmatmul.bf16.gmra.mxu0 %v184
    %v194 = vpop.f32.mrf.mxu0
    %v195 = vadd.f32 0.0, %v194
    %v196 = vpop.f32.mrf.mxu0
    %197 = vdwg.mxu0
    %v198 = vadd.f32 %v183, %v195
    %199 = vst [vmem:[#allocation7] sm:$0xff] %v198
    // Predicated region
    $region22: #{tpu_custom_call.1} parent=1 // pred_check
      _
    $region23: #{tpu_custom_call.1} parent=1 // pred_check_branch
      %201 = sbr.rel (0) target = $region25
    $region24: #{tpu_custom_call.1} parent=1 // pred_region
      %203 = vsyncadd [#allocation4], 0
      %s205 = sshll.u32 [#allocation7], 4
      %s206 = int_to_ptr.vmem [resolvable:$true] %s205
      %s207 = sshll.u32 %s2, 4
      %s208 = int_to_ptr.hbm [resolvable:$true] %s207
      %210 = dma.vmem_to_hbm [thread:$0]  %s206, 128, %s208, [#allocation4]
    $region25: #{tpu_custom_call.1} parent=1 // pred_fallthru
      _
    // Predicated region
    $region26: #{tpu_custom_call.1} parent=1 // pred_check
      _
    $region27: #{tpu_custom_call.1} parent=1 // pred_check_branch
      %212 = sbr.rel (0) target = $region29
    $region28: #{tpu_custom_call.1} parent=1 // pred_region
      %214 = dma.done [#allocation4], 128
    $region29: #{tpu_custom_call.1} parent=1 // pred_fallthru
      _
    %215 = vsyncpa [#allocation3], 1
    %216 = vsyncpa [#allocation6], 1
    %217 = vsyncpa [#allocation4], 1

</llo_original>
